<compile_context>
chip_gen: v5e
topology: v5e:2x2
jax: 0.10.0
libtpu: 0.0.40
codegen_flags: <defaults>
</compile_context>

<pallas_src>
import math

import jax
import jax.numpy as jnp
from jax.experimental import pallas as pl
from jax.experimental.pallas import tpu as pltpu


def _round_up(v, m):
    return ((v + m - 1) // m) * m


def _fused_kernel(x_ref, oth_ref, m12_ref, m2_ref,
                  w321_ref, w32_ref, ca_ref, cb_ref, b3_ref, o_ref):
    # x_ref:   (1, Cin, T)  current image / pixel tile      (lane axis = pixels)
    # oth_ref: (1, C1,  T)
    # m12/m2:  (1, T)       per-pixel validity masks
    # w321:    (C3, Cin)  = W3@W2@W1      w32: (C3, C1) = W3@W2
    # ca:      (C3, 1)    = W3@W2@b1      cb:  (C3, 1)  = W3@b2      b3: (C3, 1)
    x = x_ref[0]
    oth = oth_ref[0]
    acc = jnp.dot(w321_ref[...], x, preferred_element_type=jnp.float32)
    acc = acc + jnp.dot(w32_ref[...], oth, preferred_element_type=jnp.float32)
    acc = acc + ca_ref[...]
    o_ref[0] = (m12_ref[...] * acc
                + m2_ref[...] * cb_ref[...]
                + b3_ref[...])


def model_forward(x1, other, params, *, target_tile=4096):
    """Fused equivalent of conv3(conv2(conv1(x1) + other)), each conv 1x1, pad=1.

    x1:    (N, 35, H, W) f32
    other: (No, 22, H+2, W+2) f32 with No in {1, N}
    returns (N, 29, H+6, W+6) f32
    """
    (w1, b1), (w2, b2), (w3, b3) = params
    n, cin, h, w = x1.shape
    c1, c2, c3 = w1.shape[0], w2.shape[0], w3.shape[0]
    n_oth = other.shape[0]
    assert other.shape[1:] == (c1, h + 2, w + 2), other.shape
    assert n_oth in (1, n), other.shape

    hf, wf = h + 6, w + 6
    p_img = hf * wf

    # Lane tile: multiple of 128, per-image pixel count padded to a tile multiple.
    pp128 = _round_up(p_img, 128)
    if pp128 <= target_tile:
        tile = pp128
    else:
        n_t = -(-pp128 // target_tile)
        tile = _round_up(-(-pp128 // n_t), 128)
    pp = _round_up(pp128, tile)
    n_tiles = pp // tile

    f32 = jnp.float32
    hi = jax.lax.Precision.HIGHEST

    # ---- one-time layout glue (runs inside the same jit as the kernel) -------
    # x embedded at spatial offset 3 onto the final grid; NCHW is already
    # (batch, channel, pixel)-major so a reshape suffices (no transpose).
    xp = jnp.pad(x1, ((0, 0), (0, 0), (3, 3), (3, 3)))
    x_cm = jnp.pad(xp.reshape(n, cin, p_img),
                   ((0, 0), (0, 0), (0, pp - p_img)))
    # TODO(synk): the offset-3 zero-embedding of x could be done with in-kernel
    # DMAs of the unpadded rows to save the (H+6)(W+6)/(HW) extra HBM read.

    # `other` embedded at offset 2 (conv1's output grid); never broadcast over N.
    op = jnp.pad(other, ((0, 0), (0, 0), (2, 2), (2, 2)))
    oth_cm = jnp.pad(op.reshape(n_oth, c1, p_img),
                     ((0, 0), (0, 0), (0, pp - p_img)))

    # Per-pixel validity masks (position-only, shared across batch).
    ii = jnp.arange(hf)[:, None]
    jj = jnp.arange(wf)[None, :]
    m1_2d = ((ii >= 2) & (ii <= h + 3) & (jj >= 2) & (jj <= w + 3)).astype(f32)
    m2_2d = ((ii >= 1) & (ii <= h + 4) & (jj >= 1) & (jj <= w + 4)).astype(f32)
    m12 = jnp.pad((m1_2d * m2_2d).reshape(1, p_img), ((0, 0), (0, pp - p_img)))
    m2r = jnp.pad(m2_2d.reshape(1, p_img), ((0, 0), (0, pp - p_img)))

    # Trace-time weight folding (tiny matmuls, done once at HIGHEST precision).
    w1m, w2m, w3m = w1.reshape(c1, cin), w2.reshape(c2, c1), w3.reshape(c3, c2)
    w32 = jnp.dot(w3m, w2m, precision=hi)                    # (c3, c1)
    w321 = jnp.dot(w32, w1m, precision=hi)                   # (c3, cin)
    ca = jnp.dot(w32, b1.reshape(c1, 1), precision=hi)       # (c3, 1)
    cb = jnp.dot(w3m, b2.reshape(c2, 1), precision=hi)       # (c3, 1)
    b3c = b3.reshape(c3, 1)

    flops = 2 * n * pp * (cin * c3 + c1 * c3) + 5 * n * pp * c3
    bytes_accessed = 4 * (n * cin * pp + n_oth * c1 * pp + 2 * pp
                          + n * c3 * pp + w321.size + w32.size + 3 * c3)

    oth_map = (lambda b, t: (0, 0, t)) if n_oth == 1 else (lambda b, t: (b, 0, t))

    out_cm = pl.pallas_call(
        _fused_kernel,
        out_shape=jax.ShapeDtypeStruct((n, c3, pp), f32),
        grid=(n, n_tiles),
        in_specs=[
            pl.BlockSpec((1, cin, tile), lambda b, t: (b, 0, t)),   # x
            pl.BlockSpec((1, c1, tile), oth_map),                   # other
            pl.BlockSpec((1, tile), lambda b, t: (0, t)),           # m1*m2
            pl.BlockSpec((1, tile), lambda b, t: (0, t)),           # m2
            pl.BlockSpec((c3, cin), lambda b, t: (0, 0)),           # W3W2W1
            pl.BlockSpec((c3, c1), lambda b, t: (0, 0)),            # W3W2
            pl.BlockSpec((c3, 1), lambda b, t: (0, 0)),             # W3W2@b1
            pl.BlockSpec((c3, 1), lambda b, t: (0, 0)),             # W3@b2
            pl.BlockSpec((c3, 1), lambda b, t: (0, 0)),             # b3
        ],
        out_specs=pl.BlockSpec((1, c3, tile), lambda b, t: (b, 0, t)),
        cost_estimate=pl.CostEstimate(flops=flops, transcendentals=0,
                                      bytes_accessed=bytes_accessed),
        compiler_params=pltpu.CompilerParams(
            dimension_semantics=("parallel", "parallel"),
            vmem_limit_bytes=32 * 1024 * 1024),
    )(x_cm, oth_cm, m12, m2r, w321, w32, ca, cb, b3c)

    # (N, C3, Pp) -> (N, C3, H+6, W+6)
    return out_cm[:, :, :p_img].reshape(n, c3, hf, wf)


# ----------------------------- pure-JAX reference ---------------------------
def _conv1x1_pad1_ref(x_nchw, w, b):
    xp = jnp.pad(x_nchw, ((0, 0), (0, 0), (1, 1), (1, 1)))
    y = jnp.einsum("nchw,oc->nohw", xp, w.reshape(w.shape[0], w.shape[1]),
                   precision=jax.lax.Precision.HIGHEST)
    return y + b.reshape(1, -1, 1, 1)


def model_forward_ref(x1, other, params):
    (w1, b1), (w2, b2), (w3, b3) = params
    v1 = _conv1x1_pad1_ref(x1, w1, b1)
    v2 = _conv1x1_pad1_ref(v1 + other, w2, b2)
    v3 = _conv1x1_pad1_ref(v2, w3, b3)
    return v3


def init_conv_params(key, cin, cout):
    """PyTorch Conv2d default init: uniform(+-1/sqrt(fan_in)), fan_in = cin*1*1."""
    kw, kb = jax.random.split(key)
    bound = 1.0 / math.sqrt(cin)
    w = jax.random.uniform(kw, (cout, cin, 1, 1), jnp.float32, -bound, bound)
    b = jax.random.uniform(kb, (cout,), jnp.float32, -bound, bound)
    return w, b


if __name__ == "__main__":
    key = jax.random.PRNGKey(0)
    k1, k2, k3, kx, ko = jax.random.split(key, 5)

    params = (
        init_conv_params(k1, 35, 22),
        init_conv_params(k2, 22, 32),
        init_conv_params(k3, 32, 29),
    )

    # Small shapes; channel counts follow the module (35 -> 22 -> 32 -> 29).
    x1 = jax.random.normal(kx, (2, 35, 16, 16), jnp.float32)
    # TODO(synk): the original script's `other` (1, 29, 64, 64) does NOT
    # broadcast with conv1's padded output (1, 22, 66, 66), so the PyTorch
    # forward would raise; here `other` is given the broadcast-compatible
    # shape of conv1's output (batch-1, so it also exercises the
    # no-batch-duplication BlockSpec) so `v1 + other` is well defined.
    other = jax.random.normal(ko, (1, 22, 18, 18), jnp.float32)

    fwd = jax.jit(model_forward)
    out = fwd(x1, other, params)
    jax.block_until_ready(out)
    assert out.shape == (2, 29, 22, 22), out.shape

    ref = model_forward_ref(x1, other, params)
    assert jnp.allclose(out, ref, atol=1e-3, rtol=1e-3), float(
        jnp.max(jnp.abs(out - ref)))

    print("KERNEL_OK")
</pallas_src>

<mosaic_0001>
module attributes {stable_mosaic.version = 11 : i64} {
  func.func @_fused_kernel(%arg0: i32, %arg1: i32, %arg2: memref<1x35x512xf32, #tpu.memory_space<vmem>>, %arg3: memref<1x22x512xf32, #tpu.memory_space<vmem>>, %arg4: memref<1x512xf32, #tpu.memory_space<vmem>>, %arg5: memref<1x512xf32, #tpu.memory_space<vmem>>, %arg6: memref<29x35xf32, #tpu.memory_space<vmem>>, %arg7: memref<29x22xf32, #tpu.memory_space<vmem>>, %arg8: memref<29x1xf32, #tpu.memory_space<vmem>>, %arg9: memref<29x1xf32, #tpu.memory_space<vmem>>, %arg10: memref<29x1xf32, #tpu.memory_space<vmem>>, %arg11: memref<1x29x512xf32, #tpu.memory_space<vmem>>) attributes {dimension_semantics = [#tpu.dimension_semantics<parallel>, #tpu.dimension_semantics<parallel>], iteration_bounds = array<i64: 2, 1>, scalar_prefetch = 0 : i64, scratch_operands = 0 : i64, tpu.core_type = #tpu.core_type<tc>, window_params = [{transform_indices = @transform_0, window_bounds = array<i64: 1, 35, 512>}, {transform_indices = @transform_1, window_bounds = array<i64: 1, 22, 512>}, {transform_indices = @transform_2, window_bounds = array<i64: 1, 512>}, {transform_indices = @transform_3, window_bounds = array<i64: 1, 512>}, {pipeline_mode = #tpu.pipeline_mode<synchronous>, transform_indices = @transform_4, window_bounds = array<i64: 29, 35>}, {pipeline_mode = #tpu.pipeline_mode<synchronous>, transform_indices = @transform_5, window_bounds = array<i64: 29, 22>}, {pipeline_mode = #tpu.pipeline_mode<synchronous>, transform_indices = @transform_6, window_bounds = array<i64: 29, 1>}, {pipeline_mode = #tpu.pipeline_mode<synchronous>, transform_indices = @transform_7, window_bounds = array<i64: 29, 1>}, {pipeline_mode = #tpu.pipeline_mode<synchronous>, transform_indices = @transform_8, window_bounds = array<i64: 29, 1>}, {transform_indices = @transform_9, window_bounds = array<i64: 1, 29, 512>}]} {
    %c0 = arith.constant 0 : index
    %c0_0 = arith.constant 0 : index
    %c0_1 = arith.constant 0 : index
    %0 = vector.load %arg2[%c0, %c0_0, %c0_1] : memref<1x35x512xf32, #tpu.memory_space<vmem>>, vector<1x35x512xf32>
    %1 = vector.shape_cast %0 : vector<1x35x512xf32> to vector<35x512xf32>
    %c0_2 = arith.constant 0 : index
    %c0_3 = arith.constant 0 : index
    %c0_4 = arith.constant 0 : index
    %2 = vector.load %arg3[%c0_2, %c0_3, %c0_4] : memref<1x22x512xf32, #tpu.memory_space<vmem>>, vector<1x22x512xf32>
    %3 = vector.shape_cast %2 : vector<1x22x512xf32> to vector<22x512xf32>
    %c0_5 = arith.constant 0 : index
    %c0_6 = arith.constant 0 : index
    %4 = vector.load %arg6[%c0_5, %c0_6] : memref<29x35xf32, #tpu.memory_space<vmem>>, vector<29x35xf32>
    %cst = arith.constant dense<0.000000e+00> : vector<29x512xf32>
    %5 = tpu.matmul %4, %1, %cst {dimension_numbers = #tpu.dot_dimension_numbers<[1], [0], [0], [1], [0, 0, 1, 1], [], []>} : vector<29x35xf32>, vector<35x512xf32>, vector<29x512xf32> -> vector<29x512xf32>
    %c0_7 = arith.constant 0 : index
    %c0_8 = arith.constant 0 : index
    %6 = vector.load %arg7[%c0_7, %c0_8] : memref<29x22xf32, #tpu.memory_space<vmem>>, vector<29x22xf32>
    %cst_9 = arith.constant dense<0.000000e+00> : vector<29x512xf32>
    %7 = tpu.matmul %6, %3, %cst_9 {dimension_numbers = #tpu.dot_dimension_numbers<[1], [0], [0], [1], [0, 0, 1, 1], [], []>} : vector<29x22xf32>, vector<22x512xf32>, vector<29x512xf32> -> vector<29x512xf32>
    %8 = arith.addf %5, %7 : vector<29x512xf32>
    %c0_10 = arith.constant 0 : index
    %c0_11 = arith.constant 0 : index
    %9 = vector.load %arg8[%c0_10, %c0_11] : memref<29x1xf32, #tpu.memory_space<vmem>>, vector<29x1xf32>
    %10 = vector.broadcast %9 : vector<29x1xf32> to vector<29x512xf32>
    %11 = arith.addf %8, %10 : vector<29x512xf32>
    %c0_12 = arith.constant 0 : index
    %c0_13 = arith.constant 0 : index
    %12 = vector.load %arg4[%c0_12, %c0_13] : memref<1x512xf32, #tpu.memory_space<vmem>>, vector<1x512xf32>
    %13 = vector.broadcast %12 : vector<1x512xf32> to vector<29x512xf32>
    %14 = arith.mulf %13, %11 : vector<29x512xf32>
    %c0_14 = arith.constant 0 : index
    %c0_15 = arith.constant 0 : index
    %15 = vector.load %arg5[%c0_14, %c0_15] : memref<1x512xf32, #tpu.memory_space<vmem>>, vector<1x512xf32>
    %c0_16 = arith.constant 0 : index
    %c0_17 = arith.constant 0 : index
    %16 = vector.load %arg9[%c0_16, %c0_17] : memref<29x1xf32, #tpu.memory_space<vmem>>, vector<29x1xf32>
    %17 = vector.broadcast %15 : vector<1x512xf32> to vector<29x512xf32>
    %18 = vector.broadcast %16 : vector<29x1xf32> to vector<29x512xf32>
    %19 = arith.mulf %17, %18 : vector<29x512xf32>
    %20 = arith.addf %14, %19 : vector<29x512xf32>
    %c0_18 = arith.constant 0 : index
    %c0_19 = arith.constant 0 : index
    %21 = vector.load %arg10[%c0_18, %c0_19] : memref<29x1xf32, #tpu.memory_space<vmem>>, vector<29x1xf32>
    %22 = vector.broadcast %21 : vector<29x1xf32> to vector<29x512xf32>
    %23 = arith.addf %20, %22 : vector<29x512xf32>
    %c0_20 = arith.constant 0 : index
    %c0_21 = arith.constant 0 : index
    %c0_22 = arith.constant 0 : index
    %24 = vector.load %arg11[%c0_20, %c0_21, %c0_22] : memref<1x29x512xf32, #tpu.memory_space<vmem>>, vector<1x29x512xf32>
    %25 = vector.shape_cast %24 : vector<1x29x512xf32> to vector<29x512xf32>
    %26 = vector.shape_cast %23 : vector<29x512xf32> to vector<1x29x512xf32>
    tpu.vector_store %arg11[%c0_20, %c0_21, %c0_22], %26 {strides = array<i32>} : memref<1x29x512xf32, #tpu.memory_space<vmem>>, vector<1x29x512xf32>,
    return
  }
  func.func @transform_0(%arg0: i32, %arg1: i32) -> (i32, i32, i32) {
    %c0_i32 = arith.constant 0 : i32
    %c0_i32_0 = arith.constant 0 : i32
    return %arg0, %c0_i32, %arg1 : i32, i32, i32
  }
  func.func @transform_1(%arg0: i32, %arg1: i32) -> (i32, i32, i32) {
    %c0_i32 = arith.constant 0 : i32
    %c0_i32_0 = arith.constant 0 : i32
    %c0_i32_1 = arith.constant 0 : i32
    return %c0_i32, %c0_i32_0, %arg1 : i32, i32, i32
  }
  func.func @transform_2(%arg0: i32, %arg1: i32) -> (i32, i32) {
    %c0_i32 = arith.constant 0 : i32
    %c0_i32_0 = arith.constant 0 : i32
    return %c0_i32, %arg1 : i32, i32
  }
  func.func @transform_3(%arg0: i32, %arg1: i32) -> (i32, i32) {
    %c0_i32 = arith.constant 0 : i32
    %c0_i32_0 = arith.constant 0 : i32
    return %c0_i32, %arg1 : i32, i32
  }
  func.func @transform_4(%arg0: i32, %arg1: i32) -> (i32, i32) {
    %c0_i32 = arith.constant 0 : i32
    %c0_i32_0 = arith.constant 0 : i32
    %c0_i32_1 = arith.constant 0 : i32
    return %c0_i32, %c0_i32_0 : i32, i32
  }
  func.func @transform_5(%arg0: i32, %arg1: i32) -> (i32, i32) {
    %c0_i32 = arith.constant 0 : i32
    %c0_i32_0 = arith.constant 0 : i32
    %c0_i32_1 = arith.constant 0 : i32
    return %c0_i32, %c0_i32_0 : i32, i32
  }
  func.func @transform_6(%arg0: i32, %arg1: i32) -> (i32, i32) {
    %c0_i32 = arith.constant 0 : i32
    %c0_i32_0 = arith.constant 0 : i32
    %c0_i32_1 = arith.constant 0 : i32
    return %c0_i32, %c0_i32_0 : i32, i32
  }
  func.func @transform_7(%arg0: i32, %arg1: i32) -> (i32, i32) {
    %c0_i32 = arith.constant 0 : i32
    %c0_i32_0 = arith.constant 0 : i32
    %c0_i32_1 = arith.constant 0 : i32
    return %c0_i32, %c0_i32_0 : i32, i32
  }
  func.func @transform_8(%arg0: i32, %arg1: i32) -> (i32, i32) {
    %c0_i32 = arith.constant 0 : i32
    %c0_i32_0 = arith.constant 0 : i32
    %c0_i32_1 = arith.constant 0 : i32
    return %c0_i32, %c0_i32_0 : i32, i32
  }
  func.func @transform_9(%arg0: i32, %arg1: i32) -> (i32, i32, i32) {
    %c0_i32 = arith.constant 0 : i32
    %c0_i32_0 = arith.constant 0 : i32
    return %arg0, %c0_i32, %arg1 : i32, i32, i32
  }
}

</mosaic_0001>

<llo_original>
// kernel: model_forward.1
$region0: #{model_forward.1}
  #allocation0 [shape = 'u32[]', space=smem, size = 0x4, offset = 0x4, fixed_abs, tag = 'smem constant byte address 0x4 - core index']
  #allocation1 [shape = 'u32[72,128]{1,0:T(1,128)}', space=vmem, size = 0x9000, scoped, tag = 'internal scratch']
  %s0 = inlined_call_operand.vmem [shape: f32[2,35,512], index: 0, kind: input, shape index: {}]
  %s1 = inlined_call_operand.vmem [shape: f32[1,22,512], index: 1, kind: input, shape index: {}]
  %s2 = inlined_call_operand.vmem [shape: f32[1,512], index: 2, kind: input, shape index: {}]
  %s3 = inlined_call_operand.vmem [shape: f32[1,512], index: 3, kind: input, shape index: {}]
  %s4 = inlined_call_operand.vmem [shape: f32[29,35], index: 4, kind: input, shape index: {}]
  %s5 = inlined_call_operand.vmem [shape: f32[29,22], index: 5, kind: input, shape index: {}]
  %s6 = inlined_call_operand.vmem [shape: f32[29,1], index: 6, kind: input, shape index: {}]
  %s7 = inlined_call_operand.vmem [shape: f32[29,1], index: 7, kind: input, shape index: {}]
  %s8 = inlined_call_operand.vmem [shape: f32[29,1], index: 8, kind: input, shape index: {}]
  %s9 = inlined_call_operand.vmem [shape: f32[2,29,512], index: 9, kind: output, shape index: {}]
  %s10 = sld [smem:[#allocation0]]
  $region69: #{model_forward.1} parent=0
    _
  %s12 = ssub.s32 1, %s10
  %s13 = scalar_select 0, %s12, %s10
  loop: start=0, step=1, limit=4
  $region2: #{model_forward.1} parent=0 // loop_pre_header
    _
  $region3: #{model_forward.1} parent=0 // loop_header
    %s15 = sphi 0, %s19
    %p16 = scmp.ge.s32.totalorder %s15, 4
    %s22 = sphi 0, %s34
    %s23 = sphi 0, %s30
    %s24 = sphi 0, %s22
    %s25 = sphi 0, %s23
    %s26 = sphi 0, %s24
    %s27 = sphi 0, %s25
    %s39 = sphi 0, %s41
    %s42 = sphi 0, %s39
    %s43 = sphi 0, %s42
    %s59 = sphi 0, %s43
    %s65 = sphi 0, %s67
    %s68 = sphi 0, %s65
    %s69 = sphi 0, %s68
    %s85 = sphi 0, %s69
    %s91 = sphi 0, %s93
    %s94 = sphi 0, %s91
    %s95 = sphi 0, %s94
    %s111 = sphi 0, %s95
    %s117 = sphi 0, %s119
    %s120 = sphi 0, %s117
    %s121 = sphi 0, %s120
    %s137 = sphi 0, %s121
    %s141 = sphi 0, %s141
    %s143 = sphi 0, %s141
    %s144 = sphi 0, %s143
    %s158 = sphi 0, %s144
    %s162 = sphi 0, %s162
    %s164 = sphi 0, %s162
    %s165 = sphi 0, %s164
    %s179 = sphi 0, %s165
    %s183 = sphi 0, %s183
    %s185 = sphi 0, %s183
    %s186 = sphi 0, %s185
    %s200 = sphi 0, %s186
    %s204 = sphi 0, %s204
    %s206 = sphi 0, %s204
    %s207 = sphi 0, %s206
    %s221 = sphi 0, %s207
    %s225 = sphi 0, %s225
    %s227 = sphi 0, %s225
    %s228 = sphi 0, %s227
    %s242 = sphi 0, %s228
    %s250 = sphi 0, %s252
    %s253 = sphi 0, %s250
    %s254 = sphi 0, %s253
    %s270 = sphi 0, %s254
  $region4: #{model_forward.1} parent=0 // loop_header_branch
    %18 = sbr.rel (%p16) target = $region8
  $region5: #{model_forward.1} parent=0 // loop_body
    %s20 = ssub.s32 %s15, 1
    %s21 = ssub.s32 %s15, 2
    %s28 = sadd.s32 1, %s23
    %p29 = scmp.ge.s32.totalorder %s28, 1
    %s30 = scalar_select %p29, 0, %s28
    %s31 = sadd.s32 1, %s22
    %s32 = scalar_select %p29, %s31, %s22
    %p33 = scmp.ge.s32.totalorder %s32, 2
    %s34 = scalar_select %p33, 0, %s32
    %s35 = ssub.s32 %s22, %s34
    %s36 = ssub.s32 %s23, %s30
    %s37 = sor.u32 %s35, %s36
    %p38 = scmp.eq.s32.totalorder %s37, 0
    %s40 = sadd.s32 %s39, 1
    %s41 = scalar_select %p38, %s39, %s40
    %p44 = pneg %p38
    %p45 = scmp.eq.s32.totalorder %s15, 1
    %p46 = por %p44, %p45
    %p47 = scmp.ne.s32.totalorder %s39, %s42
    %p48 = scmp.eq.s32.totalorder %s15, 0
    %p49 = por %p47, %p48
    %p50 = scmp.ne.s32.totalorder %s39, %s42
    %p51 = scmp.eq.s32.totalorder %s20, 1
    %p52 = por %p50, %p51
    %p53 = scmp.ne.s32.totalorder %s42, %s43
    %p54 = scmp.eq.s32.totalorder %s20, 0
    %p55 = por %p53, %p54
    %p56 = scmp.ne.s32.totalorder %s42, %s43
    %p57 = scmp.eq.s32.totalorder %s21, 1
    %p58 = por %p56, %p57
    %p60 = scmp.ne.s32.totalorder %s43, %s59
    %p61 = scmp.eq.s32.totalorder %s21, 0
    %p62 = por %p60, %p61
    %s63 = ssub.s32 %s23, %s30
    %p64 = scmp.eq.s32.totalorder %s63, 0
    %s66 = sadd.s32 %s65, 1
    %s67 = scalar_select %p64, %s65, %s66
    %p70 = pneg %p64
    %p71 = scmp.eq.s32.totalorder %s15, 1
    %p72 = por %p70, %p71
    %p73 = scmp.ne.s32.totalorder %s65, %s68
    %p74 = scmp.eq.s32.totalorder %s15, 0
    %p75 = por %p73, %p74
    %p76 = scmp.ne.s32.totalorder %s65, %s68
    %p77 = scmp.eq.s32.totalorder %s20, 1
    %p78 = por %p76, %p77
    %p79 = scmp.ne.s32.totalorder %s68, %s69
    %p80 = scmp.eq.s32.totalorder %s20, 0
    %p81 = por %p79, %p80
    %p82 = scmp.ne.s32.totalorder %s68, %s69
    %p83 = scmp.eq.s32.totalorder %s21, 1
    %p84 = por %p82, %p83
    %p86 = scmp.ne.s32.totalorder %s69, %s85
    %p87 = scmp.eq.s32.totalorder %s21, 0
    %p88 = por %p86, %p87
    %s89 = ssub.s32 %s23, %s30
    %p90 = scmp.eq.s32.totalorder %s89, 0
    %s92 = sadd.s32 %s91, 1
    %s93 = scalar_select %p90, %s91, %s92
    %p96 = pneg %p90
    %p97 = scmp.eq.s32.totalorder %s15, 1
    %p98 = por %p96, %p97
    %p99 = scmp.ne.s32.totalorder %s91, %s94
    %p100 = scmp.eq.s32.totalorder %s15, 0
    %p101 = por %p99, %p100
    %p102 = scmp.ne.s32.totalorder %s91, %s94
    %p103 = scmp.eq.s32.totalorder %s20, 1
    %p104 = por %p102, %p103
    %p105 = scmp.ne.s32.totalorder %s94, %s95
    %p106 = scmp.eq.s32.totalorder %s20, 0
    %p107 = por %p105, %p106
    %p108 = scmp.ne.s32.totalorder %s94, %s95
    %p109 = scmp.eq.s32.totalorder %s21, 1
    %p110 = por %p108, %p109
    %p112 = scmp.ne.s32.totalorder %s95, %s111
    %p113 = scmp.eq.s32.totalorder %s21, 0
    %p114 = por %p112, %p113
    %s115 = ssub.s32 %s23, %s30
    %p116 = scmp.eq.s32.totalorder %s115, 0
    %s118 = sadd.s32 %s117, 1
    %s119 = scalar_select %p116, %s117, %s118
    %p122 = pneg %p116
    %p123 = scmp.eq.s32.totalorder %s15, 1
    %p124 = por %p122, %p123
    %p125 = scmp.ne.s32.totalorder %s117, %s120
    %p126 = scmp.eq.s32.totalorder %s15, 0
    %p127 = por %p125, %p126
    %p128 = scmp.ne.s32.totalorder %s117, %s120
    %p129 = scmp.eq.s32.totalorder %s20, 1
    %p130 = por %p128, %p129
    %p131 = scmp.ne.s32.totalorder %s120, %s121
    %p132 = scmp.eq.s32.totalorder %s20, 0
    %p133 = por %p131, %p132
    %p134 = scmp.ne.s32.totalorder %s120, %s121
    %p135 = scmp.eq.s32.totalorder %s21, 1
    %p136 = por %p134, %p135
    %p138 = scmp.ne.s32.totalorder %s121, %s137
    %p139 = scmp.eq.s32.totalorder %s21, 0
    %p140 = por %p138, %p139
    %s142 = sadd.s32 %s141, 1
    %p145 = scmp.eq.s32.totalorder %s15, 1
    %p146 = scmp.ne.s32.totalorder %s141, %s143
    %p147 = scmp.eq.s32.totalorder %s15, 0
    %p148 = por %p146, %p147
    %p149 = scmp.ne.s32.totalorder %s141, %s143
    %p150 = scmp.eq.s32.totalorder %s20, 1
    %p151 = por %p149, %p150
    %p152 = scmp.ne.s32.totalorder %s143, %s144
    %p153 = scmp.eq.s32.totalorder %s20, 0
    %p154 = por %p152, %p153
    %p155 = scmp.ne.s32.totalorder %s143, %s144
    %p156 = scmp.eq.s32.totalorder %s21, 1
    %p157 = por %p155, %p156
    %p159 = scmp.ne.s32.totalorder %s144, %s158
    %p160 = scmp.eq.s32.totalorder %s21, 0
    %p161 = por %p159, %p160
    %s163 = sadd.s32 %s162, 1
    %p166 = scmp.eq.s32.totalorder %s15, 1
    %p167 = scmp.ne.s32.totalorder %s162, %s164
    %p168 = scmp.eq.s32.totalorder %s15, 0
    %p169 = por %p167, %p168
    %p170 = scmp.ne.s32.totalorder %s162, %s164
    %p171 = scmp.eq.s32.totalorder %s20, 1
    %p172 = por %p170, %p171
    %p173 = scmp.ne.s32.totalorder %s164, %s165
    %p174 = scmp.eq.s32.totalorder %s20, 0
    %p175 = por %p173, %p174
    %p176 = scmp.ne.s32.totalorder %s164, %s165
    %p177 = scmp.eq.s32.totalorder %s21, 1
    %p178 = por %p176, %p177
    %p180 = scmp.ne.s32.totalorder %s165, %s179
    %p181 = scmp.eq.s32.totalorder %s21, 0
    %p182 = por %p180, %p181
    %s184 = sadd.s32 %s183, 1
    %p187 = scmp.eq.s32.totalorder %s15, 1
    %p188 = scmp.ne.s32.totalorder %s183, %s185
    %p189 = scmp.eq.s32.totalorder %s15, 0
    %p190 = por %p188, %p189
    %p191 = scmp.ne.s32.totalorder %s183, %s185
    %p192 = scmp.eq.s32.totalorder %s20, 1
    %p193 = por %p191, %p192
    %p194 = scmp.ne.s32.totalorder %s185, %s186
    %p195 = scmp.eq.s32.totalorder %s20, 0
    %p196 = por %p194, %p195
    %p197 = scmp.ne.s32.totalorder %s185, %s186
    %p198 = scmp.eq.s32.totalorder %s21, 1
    %p199 = por %p197, %p198
    %p201 = scmp.ne.s32.totalorder %s186, %s200
    %p202 = scmp.eq.s32.totalorder %s21, 0
    %p203 = por %p201, %p202
    %s205 = sadd.s32 %s204, 1
    %p208 = scmp.eq.s32.totalorder %s15, 1
    %p209 = scmp.ne.s32.totalorder %s204, %s206
    %p210 = scmp.eq.s32.totalorder %s15, 0
    %p211 = por %p209, %p210
    %p212 = scmp.ne.s32.totalorder %s204, %s206
    %p213 = scmp.eq.s32.totalorder %s20, 1
    %p214 = por %p212, %p213
    %p215 = scmp.ne.s32.totalorder %s206, %s207
    %p216 = scmp.eq.s32.totalorder %s20, 0
    %p217 = por %p215, %p216
    %p218 = scmp.ne.s32.totalorder %s206, %s207
    %p219 = scmp.eq.s32.totalorder %s21, 1
    %p220 = por %p218, %p219
    %p222 = scmp.ne.s32.totalorder %s207, %s221
    %p223 = scmp.eq.s32.totalorder %s21, 0
    %p224 = por %p222, %p223
    %s226 = sadd.s32 %s225, 1
    %p229 = scmp.eq.s32.totalorder %s15, 1
    %p230 = scmp.ne.s32.totalorder %s225, %s227
    %p231 = scmp.eq.s32.totalorder %s15, 0
    %p232 = por %p230, %p231
    %p233 = scmp.ne.s32.totalorder %s225, %s227
    %p234 = scmp.eq.s32.totalorder %s20, 1
    %p235 = por %p233, %p234
    %p236 = scmp.ne.s32.totalorder %s227, %s228
    %p237 = scmp.eq.s32.totalorder %s20, 0
    %p238 = por %p236, %p237
    %p239 = scmp.ne.s32.totalorder %s227, %s228
    %p240 = scmp.eq.s32.totalorder %s21, 1
    %p241 = por %p239, %p240
    %p243 = scmp.ne.s32.totalorder %s228, %s242
    %p244 = scmp.eq.s32.totalorder %s21, 0
    %p245 = por %p243, %p244
    %s246 = ssub.s32 %s22, %s34
    %s247 = ssub.s32 %s23, %s30
    %s248 = sor.u32 %s246, %s247
    %p249 = scmp.eq.s32.totalorder %s248, 0
    %s251 = sadd.s32 %s250, 1
    %s252 = scalar_select %p249, %s250, %s251
    %p255 = pneg %p249
    %p256 = scmp.eq.s32.totalorder %s15, 1
    %p257 = por %p255, %p256
    %p258 = scmp.ne.s32.totalorder %s250, %s253
    %p259 = scmp.eq.s32.totalorder %s15, 0
    %p260 = por %p258, %p259
    %p261 = scmp.ne.s32.totalorder %s250, %s253
    %p262 = scmp.eq.s32.totalorder %s20, 1
    %p263 = por %p261, %p262
    %p264 = scmp.ne.s32.totalorder %s253, %s254
    %p265 = scmp.eq.s32.totalorder %s20, 0
    %p266 = por %p264, %p265
    %p267 = scmp.ne.s32.totalorder %s253, %s254
    %p268 = scmp.eq.s32.totalorder %s21, 1
    %p269 = por %p267, %p268
    %p271 = scmp.ne.s32.totalorder %s254, %s270
    %p272 = scmp.eq.s32.totalorder %s21, 0
    %p273 = por %p271, %p272
    %p274 = scmp.le.s32.totalorder 1, %s15
    %p275 = scmp.lt.s32.totalorder %s15, 3
    %p276 = pnand %p274, %p275
    %p277 = pneg %p276
    // Predicated region
    $region9: #{model_forward.1} parent=5 // pred_check
      _
    $region10: #{model_forward.1} parent=5 // pred_check_branch
      %279 = sbr.rel (%p276) target = $region12
    $region11: #{model_forward.1} parent=5 // pred_region
      %s280 = ssub.s32 %s15, 1
      // Predicated region
      $region13: #{model_forward.1} parent=11 // pred_check
        %p281 = pneg %p81
      $region14: #{model_forward.1} parent=11 // pred_check_branch
        %283 = sbr.rel (%p281) target = $region16
      $region15: #{model_forward.1} parent=11 // pred_region
        %s284 = smul.u32 4, %s25
        %p285 = scmp.lt.s32.totalorder %s284, 3
        %s286 = scalar_select %p285, %s284, 3
        %s287 = smul.addr %s286, 8
        %s288 = scalar_lea.vmem %s1, %s287
        %s289 = smul.u32 4, %s25
      $region16: #{model_forward.1} parent=11 // pred_fallthru
        _
      // Predicated region
      $region17: #{model_forward.1} parent=11 // pred_check
        %p290 = pneg %p107
      $region18: #{model_forward.1} parent=11 // pred_check_branch
        %292 = sbr.rel (%p290) target = $region20
      $region19: #{model_forward.1} parent=11 // pred_region
        %s293 = smul.u32 4, %s25
        %p294 = scmp.lt.s32.totalorder %s293, 3
        %s295 = scalar_select %p294, %s293, 3
        %s296 = scalar_lea.vmem %s2, %s295
        %s297 = smul.u32 4, %s25
      $region20: #{model_forward.1} parent=11 // pred_fallthru
        _
      // Predicated region
      $region21: #{model_forward.1} parent=11 // pred_check
        %p298 = pneg %p133
      $region22: #{model_forward.1} parent=11 // pred_check_branch
        %300 = sbr.rel (%p298) target = $region24
      $region23: #{model_forward.1} parent=11 // pred_region
        %s301 = smul.u32 4, %s25
        %p302 = scmp.lt.s32.totalorder %s301, 3
        %s303 = scalar_select %p302, %s301, 3
        %s304 = scalar_lea.vmem %s3, %s303
        %s305 = smul.u32 4, %s25
      $region24: #{model_forward.1} parent=11 // pred_fallthru
        _
      // Predicated region
      $region25: #{model_forward.1} parent=11 // pred_check
        %p306 = pneg %p154
      $region26: #{model_forward.1} parent=11 // pred_check_branch
        %308 = sbr.rel (%p306) target = $region28
      $region27: #{model_forward.1} parent=11 // pred_region
        _
      $region28: #{model_forward.1} parent=11 // pred_fallthru
        _
      // Predicated region
      $region29: #{model_forward.1} parent=11 // pred_check
        %p309 = pneg %p175
      $region30: #{model_forward.1} parent=11 // pred_check_branch
        %311 = sbr.rel (%p309) target = $region32
      $region31: #{model_forward.1} parent=11 // pred_region
        _
      $region32: #{model_forward.1} parent=11 // pred_fallthru
        _
      // Predicated region
      $region33: #{model_forward.1} parent=11 // pred_check
        %p312 = pneg %p196
      $region34: #{model_forward.1} parent=11 // pred_check_branch
        %314 = sbr.rel (%p312) target = $region36
      $region35: #{model_forward.1} parent=11 // pred_region
        _
      $region36: #{model_forward.1} parent=11 // pred_fallthru
        _
      // Predicated region
      $region37: #{model_forward.1} parent=11 // pred_check
        %p315 = pneg %p217
      $region38: #{model_forward.1} parent=11 // pred_check_branch
        %317 = sbr.rel (%p315) target = $region40
      $region39: #{model_forward.1} parent=11 // pred_region
        _
      $region40: #{model_forward.1} parent=11 // pred_fallthru
        _
      // Predicated region
      $region41: #{model_forward.1} parent=11 // pred_check
        %p318 = pneg %p238
      $region42: #{model_forward.1} parent=11 // pred_check_branch
        %320 = sbr.rel (%p318) target = $region44
      $region43: #{model_forward.1} parent=11 // pred_region
        _
      $region44: #{model_forward.1} parent=11 // pred_fallthru
        _
    $region12: #{model_forward.1} parent=5 // pred_fallthru
      _
    %p321 = scmp.lt.s32.totalorder %s15, 2
    // Predicated region
    $region45: #{model_forward.1} parent=5 // pred_check
      %p322 = pneg %p321
    $region46: #{model_forward.1} parent=5 // pred_check_branch
      %324 = sbr.rel (%p322) target = $region48
    $region47: #{model_forward.1} parent=5 // pred_region
      // Predicated region
      $region49: #{model_forward.1} parent=47 // pred_check
        %p325 = pneg %p49
      $region50: #{model_forward.1} parent=47 // pred_check_branch
        %327 = sbr.rel (%p325) target = $region52
      $region51: #{model_forward.1} parent=47 // pred_region
        %s328 = smul.u32 4, %s23
        %p329 = scmp.lt.s32.totalorder %s22, 1
        %s330 = scalar_select %p329, %s22, 1
        %p331 = scmp.lt.s32.totalorder %s328, 3
        %s332 = scalar_select %p331, %s328, 3
        %s333 = smul.addr %s330, 20
        %s334 = sadd.s32 %s332, %s333
        %s335 = smul.addr %s334, 8
        %s336 = scalar_lea.vmem %s0, %s335
        %s337 = smul.u32 4, %s23
      $region52: #{model_forward.1} parent=47 // pred_fallthru
        _
    $region48: #{model_forward.1} parent=5 // pred_fallthru
      _
    %p338 = scmp.le.s32.totalorder 1, %s15
    %p339 = scmp.lt.s32.totalorder %s15, 3
    %p340 = pnand %p338, %p339
    %p341 = pneg %p340
    // Predicated region
    $region53: #{model_forward.1} parent=5 // pred_check
      _
    $region54: #{model_forward.1} parent=5 // pred_check_branch
      %343 = sbr.rel (%p340) target = $region56
    $region55: #{model_forward.1} parent=5 // pred_region
      %s344 = ssub.s32 %s15, 1
      %s345 = smul.u32 4, %s25
      %p346 = scmp.lt.s32.totalorder %s24, 1
      %s347 = scalar_select %p346, %s24, 1
      %p348 = scmp.lt.s32.totalorder %s345, 3
      %s349 = scalar_select %p348, %s345, 3
      %s350 = smul.addr %s347, 20
      %s351 = sadd.s32 %s349, %s350
      %s352 = smul.addr %s351, 8
      %s353 = scalar_lea.vmem %s0, %s352
      %p354 = pneg %p55
      %p355 = pneg %p52
      %s356 = smul.u32 4, %s25
      %p357 = scmp.lt.s32.totalorder %s356, 3
      %s358 = scalar_select %p357, %s356, 3
      %s359 = smul.addr %s358, 8
      %s360 = scalar_lea.vmem %s1, %s359
      %p361 = pneg %p81
      %p362 = pneg %p78
      %s363 = smul.u32 4, %s25
      %p364 = scmp.lt.s32.totalorder %s363, 3
      %s365 = scalar_select %p364, %s363, 3
      %s366 = scalar_lea.vmem %s2, %s365
      %p367 = pneg %p107
      %p368 = pneg %p104
      %s369 = smul.u32 4, %s25
      %p370 = scmp.lt.s32.totalorder %s369, 3
      %s371 = scalar_select %p370, %s369, 3
      %s372 = scalar_lea.vmem %s3, %s371
      %p373 = pneg %p133
      %p374 = pneg %p130
      %p375 = pneg %p154
      %p376 = pneg %p151
      %p377 = pneg %p175
      %p378 = pneg %p172
      %p379 = pneg %p196
      %p380 = pneg %p193
      %p381 = pneg %p217
      %p382 = pneg %p214
      %p383 = pneg %p238
      %p384 = pneg %p235
      %p385 = pneg %p266
      %p386 = pneg %p263
      %s387 = smul.u32 4, %s25
      %p388 = scmp.lt.s32.totalorder %s24, 1
      %s389 = scalar_select %p388, %s24, 1
      %p390 = scmp.lt.s32.totalorder %s387, 3
      %s391 = scalar_select %p390, %s387, 3
      %s392 = smul.addr %s389, 16
      %s393 = sadd.s32 %s391, %s392
      %s394 = smul.addr %s393, 8
      %s395 = scalar_lea.vmem %s9, %s394
      %s396 = smul.u32 4, %s25
      %p397 = scmp.lt.s32.totalorder %s24, 1
      %s398 = scalar_select %p397, %s24, 1
      %p399 = scmp.lt.s32.totalorder %s396, 3
      %s400 = scalar_select %p399, %s396, 3
      %s401 = smul.addr %s398, 20
      %s402 = sadd.s32 %s400, %s401
      %s403 = smul.addr %s402, 8
      %s404 = scalar_lea.vmem %s0, %s403
      %s405 = smul.u32 4, %s25
      %s406 = smul.u32 4, %s25
      %p407 = scmp.lt.s32.totalorder %s406, 3
      %s408 = scalar_select %p407, %s406, 3
      %s409 = smul.addr %s408, 8
      %s410 = scalar_lea.vmem %s1, %s409
      %s411 = smul.u32 4, %s25
      %s412 = smul.u32 4, %s25
      %p413 = scmp.lt.s32.totalorder %s412, 3
      %s414 = scalar_select %p413, %s412, 3
      %s415 = scalar_lea.vmem %s2, %s414
      %s416 = smul.u32 4, %s25
      %s417 = smul.u32 4, %s25
      %p418 = scmp.lt.s32.totalorder %s417, 3
      %s419 = scalar_select %p418, %s417, 3
      %s420 = scalar_lea.vmem %s3, %s419
      %s421 = smul.u32 4, %s25
      %s422 = smul.u32 4, %s25
      %p423 = scmp.lt.s32.totalorder %s24, 1
      %s424 = scalar_select %p423, %s24, 1
      %p425 = scmp.lt.s32.totalorder %s422, 3
      %s426 = scalar_select %p425, %s422, 3
      %s427 = smul.addr %s424, 16
      %s428 = sadd.s32 %s426, %s427
      %s429 = smul.addr %s428, 8
      %s430 = scalar_lea.vmem %s9, %s429
      %s431 = smul.u32 4, %s25
      %v432 = vld [vmem:[%s404] sm:$0xff]
      %v433 = vld [vmem:[%s404 + $0x8] sm:$0xff]
      %v434 = vld [vmem:[%s404 + $0x10] sm:$0xff]
      %v435 = vld [vmem:[%s404 + $0x18] sm:$0xff]
      %v436 = vld [vmem:[%s404 + $0x20] sm:$0xff]
      %v437 = vld [vmem:[%s404 + $0x28] sm:$0xff]
      %v438 = vld [vmem:[%s404 + $0x30] sm:$0xff]
      %v439 = vld [vmem:[%s404 + $0x38] sm:$0xff]
      %v440 = vld [vmem:[%s404 + $0x40] sm:$0xff]
      %v441 = vld [vmem:[%s404 + $0x48] sm:$0xff]
      %v442 = vld [vmem:[%s404 + $0x50] sm:$0xff]
      %v443 = vld [vmem:[%s404 + $0x58] sm:$0xff]
      %v444 = vld [vmem:[%s404 + $0x60] sm:$0xff]
      %v445 = vld [vmem:[%s404 + $0x68] sm:$0xff]
      %v446 = vld [vmem:[%s404 + $0x70] sm:$0xff]
      %v447 = vld [vmem:[%s404 + $0x78] sm:$0xff]
      %v448 = vld [vmem:[%s404 + $0x80] sm:$0x7]
      %v449 = vld [vmem:[%s404 + $0x88] sm:$0x7]
      %v450 = vld [vmem:[%s404 + $0x90] sm:$0x7]
      %v451 = vld [vmem:[%s404 + $0x98] sm:$0x7]
      %v452 = vld [vmem:[%s410] sm:$0xff]
      %v453 = vld [vmem:[%s410 + $0x8] sm:$0xff]
      %v454 = vld [vmem:[%s410 + $0x10] sm:$0xff]
      %v455 = vld [vmem:[%s410 + $0x18] sm:$0xff]
      %v456 = vld [vmem:[%s410 + $0x20] sm:$0xff]
      %v457 = vld [vmem:[%s410 + $0x28] sm:$0xff]
      %v458 = vld [vmem:[%s410 + $0x30] sm:$0xff]
      %v459 = vld [vmem:[%s410 + $0x38] sm:$0xff]
      %v460 = vld [vmem:[%s410 + $0x40] sm:$0x3f]
      %v461 = vld [vmem:[%s410 + $0x48] sm:$0x3f]
      %v462 = vld [vmem:[%s410 + $0x50] sm:$0x3f]
      %v463 = vld [vmem:[%s410 + $0x58] sm:$0x3f]
      %v464 = vld [vmem:[%s4] sm:$0xff]
      %v465 = vld [vmem:[%s4 + $0x8] sm:$0xff]
      %v466 = vld [vmem:[%s4 + $0x10] sm:$0xff]
      %v467 = vld [vmem:[%s4 + $0x18] sm:$0x1f]
      %v468 = vld [vmem:[%s5] sm:$0xff]
      %v469 = vld [vmem:[%s5 + $0x8] sm:$0xff]
      %v470 = vld [vmem:[%s5 + $0x10] sm:$0xff]
      %v471 = vld [vmem:[%s5 + $0x18] sm:$0x1f]
      %vm472 = vcmask 179200
      %v474 = vsel %vm472, %v468, 0
      %v477 = vsel %vm472, %v469, 0
      %v480 = vsel %vm472, %v470, 0
      %v483 = vsel %vm472, %v471, 0
      %vm485 = vcmask 1045504
      %v487 = vsel %vm485, %v460, 0
      %v490 = vsel %vm485, %v461, 0
      %v493 = vsel %vm485, %v462, 0
      %v496 = vsel %vm485, %v463, 0
      %498 = vmatpush.msra.mxu0 0.0
      %499 = vmatpush.msra.mxu0 0.0
      %500 = vmatpush.msra.mxu0 0.0
      %501 = vmatpush.msra.mxu0 0.0
      %502 = vmatpush.msra.mxu0 0.0
      %503 = vmatpush.msra.mxu0 0.0
      %504 = vmatpush.msra.mxu0 0.0
      %505 = vmatpush.msra.mxu0 0.0
      %506 = vmatpush.msra.mxu0 0.0
      %507 = vmatpush.msra.mxu0 0.0
      %508 = vmatpush.msra.mxu0 0.0
      %509 = vmatpush.msra.mxu0 0.0
      %510 = vmatpush.msra.mxu0 0.0
      %511 = vmatpush.msra.mxu0 %v487
      %512 = vmatpush.msra.mxu0 %v456
      %513 = vmatpush.msra.mxu0 %v452
      %514 = vmatmul.f32.gmra.mxu0 %v474
      %v515 = vpop.f32.mrf.mxu0
      %v516 = vadd.f32 0.0, %v515
      %517 = vmatmul.f32.gmra.mxu0 %v477
      %v518 = vpop.f32.mrf.mxu0
      %v519 = vadd.f32 0.0, %v518
      %520 = vmatmul.f32.gmra.mxu0 %v480
      %v521 = vpop.f32.mrf.mxu0
      %v522 = vadd.f32 0.0, %v521
      %523 = vmatmul.f32.gmra.mxu0 %v483
      %v524 = vpop.f32.mrf.mxu0
      %v525 = vadd.f32 0.0, %v524
      %526 = vdwg.mxu0
      %527 = vmatpush.msra.mxu0 0.0
      %528 = vmatpush.msra.mxu0 0.0
      %529 = vmatpush.msra.mxu0 0.0
      %530 = vmatpush.msra.mxu0 0.0
      %531 = vmatpush.msra.mxu0 0.0
      %532 = vmatpush.msra.mxu0 0.0
      %533 = vmatpush.msra.mxu0 0.0
      %534 = vmatpush.msra.mxu0 0.0
      %535 = vmatpush.msra.mxu0 0.0
      %536 = vmatpush.msra.mxu0 0.0
      %537 = vmatpush.msra.mxu0 0.0
      %538 = vmatpush.msra.mxu0 0.0
      %539 = vmatpush.msra.mxu0 0.0
      %540 = vmatpush.msra.mxu0 %v490
      %541 = vmatpush.msra.mxu0 %v457
      %542 = vmatpush.msra.mxu0 %v453
      %543 = vmatmul.f32.gmra.mxu0 %v474
      %v544 = vpop.f32.mrf.mxu0
      %v545 = vadd.f32 0.0, %v544
      %546 = vmatmul.f32.gmra.mxu0 %v477
      %v547 = vpop.f32.mrf.mxu0
      %v548 = vadd.f32 0.0, %v547
      %549 = vmatmul.f32.gmra.mxu0 %v480
      %v550 = vpop.f32.mrf.mxu0
      %v551 = vadd.f32 0.0, %v550
      %552 = vmatmul.f32.gmra.mxu0 %v483
      %v553 = vpop.f32.mrf.mxu0
      %v554 = vadd.f32 0.0, %v553
      %555 = vdwg.mxu0
      %556 = vmatpush.msra.mxu0 0.0
      %557 = vmatpush.msra.mxu0 0.0
      %558 = vmatpush.msra.mxu0 0.0
      %559 = vmatpush.msra.mxu0 0.0
      %560 = vmatpush.msra.mxu0 0.0
      %561 = vmatpush.msra.mxu0 0.0
      %562 = vmatpush.msra.mxu0 0.0
      %563 = vmatpush.msra.mxu0 0.0
      %564 = vmatpush.msra.mxu0 0.0
      %565 = vmatpush.msra.mxu0 0.0
      %566 = vmatpush.msra.mxu0 0.0
      %567 = vmatpush.msra.mxu0 0.0
      %568 = vmatpush.msra.mxu0 0.0
      %569 = vmatpush.msra.mxu0 %v493
      %570 = vmatpush.msra.mxu0 %v458
      %571 = vmatpush.msra.mxu0 %v454
      %572 = vmatmul.f32.gmra.mxu0 %v474
      %v573 = vpop.f32.mrf.mxu0
      %v574 = vadd.f32 0.0, %v573
      %575 = vmatmul.f32.gmra.mxu0 %v477
      %v576 = vpop.f32.mrf.mxu0
      %v577 = vadd.f32 0.0, %v576
      %578 = vmatmul.f32.gmra.mxu0 %v480
      %v579 = vpop.f32.mrf.mxu0
      %v580 = vadd.f32 0.0, %v579
      %581 = vmatmul.f32.gmra.mxu0 %v483
      %v582 = vpop.f32.mrf.mxu0
      %v583 = vadd.f32 0.0, %v582
      %584 = vdwg.mxu0
      %585 = vmatpush.msra.mxu0 0.0
      %586 = vmatpush.msra.mxu0 0.0
      %587 = vmatpush.msra.mxu0 0.0
      %588 = vmatpush.msra.mxu0 0.0
      %589 = vmatpush.msra.mxu0 0.0
      %590 = vmatpush.msra.mxu0 0.0
      %591 = vmatpush.msra.mxu0 0.0
      %592 = vmatpush.msra.mxu0 0.0
      %593 = vmatpush.msra.mxu0 0.0
      %594 = vmatpush.msra.mxu0 0.0
      %595 = vmatpush.msra.mxu0 0.0
      %596 = vmatpush.msra.mxu0 0.0
      %597 = vmatpush.msra.mxu0 0.0
      %598 = vmatpush.msra.mxu0 %v496
      %599 = vmatpush.msra.mxu0 %v459
      %600 = vmatpush.msra.mxu0 %v455
      %601 = vmatmul.f32.gmra.mxu0 %v474
      %v602 = vpop.f32.mrf.mxu0
      %v603 = vadd.f32 0.0, %v602
      %604 = vmatmul.f32.gmra.mxu0 %v477
      %v605 = vpop.f32.mrf.mxu0
      %v606 = vadd.f32 0.0, %v605
      %607 = vmatmul.f32.gmra.mxu0 %v480
      %v608 = vpop.f32.mrf.mxu0
      %v609 = vadd.f32 0.0, %v608
      %610 = vmatmul.f32.gmra.mxu0 %v483
      %v611 = vpop.f32.mrf.mxu0
      %v612 = vadd.f32 0.0, %v611
      %613 = vdwg.mxu0
      %vm614 = vcmask 285696
      %v616 = vsel %vm614, %v464, 0
      %v619 = vsel %vm614, %v465, 0
      %v622 = vsel %vm614, %v466, 0
      %v625 = vsel %vm614, %v467, 0
      %vm627 = vcmask 1042432
      %v629 = vsel %vm627, %v448, 0
      %v632 = vsel %vm627, %v449, 0
      %v635 = vsel %vm627, %v450, 0
      %v638 = vsel %vm627, %v451, 0
      %640 = vmatpush.msra.mxu0 0.0
      %641 = vmatpush.msra.mxu0 0.0
      %642 = vmatpush.msra.mxu0 0.0
      %643 = vmatpush.msra.mxu0 0.0
      %644 = vmatpush.msra.mxu0 0.0
      %645 = vmatpush.msra.mxu0 0.0
      %646 = vmatpush.msra.mxu0 0.0
      %647 = vmatpush.msra.mxu0 0.0
      %648 = vmatpush.msra.mxu0 0.0
      %649 = vmatpush.msra.mxu0 0.0
      %650 = vmatpush.msra.mxu0 0.0
      %651 = vmatpush.msra.mxu0 %v629
      %652 = vmatpush.msra.mxu0 %v444
      %653 = vmatpush.msra.mxu0 %v440
      %654 = vmatpush.msra.mxu0 %v436
      %655 = vmatpush.msra.mxu0 %v432
      %656 = vmatmul.f32.gmra.mxu0 %v616
      %v657 = vpop.f32.mrf.mxu0
      %v658 = vadd.f32 %v516, %v657
      %659 = vmatmul.f32.gmra.mxu0 %v619
      %v660 = vpop.f32.mrf.mxu0
      %v661 = vadd.f32 %v519, %v660
      %662 = vmatmul.f32.gmra.mxu0 %v622
      %v663 = vpop.f32.mrf.mxu0
      %v664 = vadd.f32 %v522, %v663
      %665 = vmatmul.f32.gmra.mxu0 %v625
      %v666 = vpop.f32.mrf.mxu0
      %v667 = vadd.f32 %v525, %v666
      %668 = vdwg.mxu0
      %669 = vmatpush.msra.mxu0 0.0
      %670 = vmatpush.msra.mxu0 0.0
      %671 = vmatpush.msra.mxu0 0.0
      %672 = vmatpush.msra.mxu0 0.0
      %673 = vmatpush.msra.mxu0 0.0
      %674 = vmatpush.msra.mxu0 0.0
      %675 = vmatpush.msra.mxu0 0.0
      %676 = vmatpush.msra.mxu0 0.0
      %677 = vmatpush.msra.mxu0 0.0
      %678 = vmatpush.msra.mxu0 0.0
      %679 = vmatpush.msra.mxu0 0.0
      %680 = vmatpush.msra.mxu0 %v632
      %681 = vmatpush.msra.mxu0 %v445
      %682 = vmatpush.msra.mxu0 %v441
      %683 = vmatpush.msra.mxu0 %v437
      %684 = vmatpush.msra.mxu0 %v433
      %685 = vmatmul.f32.gmra.mxu0 %v616
      %v686 = vpop.f32.mrf.mxu0
      %v687 = vadd.f32 %v545, %v686
      %688 = vmatmul.f32.gmra.mxu0 %v619
      %v689 = vpop.f32.mrf.mxu0
      %v690 = vadd.f32 %v548, %v689
      %691 = vmatmul.f32.gmra.mxu0 %v622
      %v692 = vpop.f32.mrf.mxu0
      %v693 = vadd.f32 %v551, %v692
      %694 = vmatmul.f32.gmra.mxu0 %v625
      %v695 = vpop.f32.mrf.mxu0
      %v696 = vadd.f32 %v554, %v695
      %697 = vdwg.mxu0
      %698 = vmatpush.msra.mxu0 0.0
      %699 = vmatpush.msra.mxu0 0.0
      %700 = vmatpush.msra.mxu0 0.0
      %701 = vmatpush.msra.mxu0 0.0
      %702 = vmatpush.msra.mxu0 0.0
      %703 = vmatpush.msra.mxu0 0.0
      %704 = vmatpush.msra.mxu0 0.0
      %705 = vmatpush.msra.mxu0 0.0
      %706 = vmatpush.msra.mxu0 0.0
      %707 = vmatpush.msra.mxu0 0.0
      %708 = vmatpush.msra.mxu0 0.0
      %709 = vmatpush.msra.mxu0 %v635
      %710 = vmatpush.msra.mxu0 %v446
      %711 = vmatpush.msra.mxu0 %v442
      %712 = vmatpush.msra.mxu0 %v438
      %713 = vmatpush.msra.mxu0 %v434
      %714 = vmatmul.f32.gmra.mxu0 %v616
      %v715 = vpop.f32.mrf.mxu0
      %v716 = vadd.f32 %v574, %v715
      %717 = vmatmul.f32.gmra.mxu0 %v619
      %v718 = vpop.f32.mrf.mxu0
      %v719 = vadd.f32 %v577, %v718
      %720 = vmatmul.f32.gmra.mxu0 %v622
      %v721 = vpop.f32.mrf.mxu0
      %v722 = vadd.f32 %v580, %v721
      %723 = vmatmul.f32.gmra.mxu0 %v625
      %v724 = vpop.f32.mrf.mxu0
      %v725 = vadd.f32 %v583, %v724
      %726 = vdwg.mxu0
      %727 = vmatpush.msra.mxu0 0.0
      %728 = vmatpush.msra.mxu0 0.0
      %729 = vmatpush.msra.mxu0 0.0
      %730 = vmatpush.msra.mxu0 0.0
      %731 = vmatpush.msra.mxu0 0.0
      %732 = vmatpush.msra.mxu0 0.0
      %733 = vmatpush.msra.mxu0 0.0
      %734 = vmatpush.msra.mxu0 0.0
      %735 = vmatpush.msra.mxu0 0.0
      %736 = vmatpush.msra.mxu0 0.0
      %737 = vmatpush.msra.mxu0 0.0
      %738 = vmatpush.msra.mxu0 %v638
      %739 = vmatpush.msra.mxu0 %v447
      %740 = vmatpush.msra.mxu0 %v443
      %741 = vmatpush.msra.mxu0 %v439
      %742 = vmatpush.msra.mxu0 %v435
      %743 = vmatmul.f32.gmra.mxu0 %v616
      %v744 = vpop.f32.mrf.mxu0
      %v745 = vadd.f32 %v603, %v744
      %746 = vmatmul.f32.gmra.mxu0 %v619
      %v747 = vpop.f32.mrf.mxu0
      %v748 = vadd.f32 %v606, %v747
      %749 = vmatmul.f32.gmra.mxu0 %v622
      %v750 = vpop.f32.mrf.mxu0
      %v751 = vadd.f32 %v609, %v750
      %752 = vmatmul.f32.gmra.mxu0 %v625
      %v753 = vpop.f32.mrf.mxu0
      %v754 = vadd.f32 %v612, %v753
      %755 = vdwg.mxu0
      %v756 = vld [vmem:[%s6] sm:$0xff]
      %v757 = vld [vmem:[%s6 + $0x8] sm:$0xff]
      %v758 = vld [vmem:[%s6 + $0x10] sm:$0xff]
      %v759 = vld [vmem:[%s6 + $0x18] sm:$0x1f]
      %761 = vset.pattern.permute.xlu0 0
      %762 = vperm.xlu0 %761, %v756
      %v763 = vpop.permute.xlu0 %762
      %766 = vset.pattern.permute.xlu0 0
      %767 = vperm.xlu0 %766, %v757
      %v768 = vpop.permute.xlu0 %767
      %771 = vset.pattern.permute.xlu0 0
      %772 = vperm.xlu0 %771, %v758
      %v773 = vpop.permute.xlu0 %772
      %776 = vset.pattern.permute.xlu0 0
      %777 = vperm.xlu0 %776, %v759
      %v778 = vpop.permute.xlu0 %777
      %v780 = vadd.f32 %v658, %v763
      %v781 = vadd.f32 %v687, %v763
      %v782 = vadd.f32 %v716, %v763
      %v783 = vadd.f32 %v745, %v763
      %v784 = vadd.f32 %v661, %v768
      %v785 = vadd.f32 %v690, %v768
      %v786 = vadd.f32 %v719, %v768
      %v787 = vadd.f32 %v748, %v768
      %v788 = vadd.f32 %v664, %v773
      %v789 = vadd.f32 %v693, %v773
      %v790 = vadd.f32 %v722, %v773
      %v791 = vadd.f32 %v751, %v773
      %v792 = vadd.f32 %v667, %v778
      %v793 = vadd.f32 %v696, %v778
      %v794 = vadd.f32 %v725, %v778
      %v795 = vadd.f32 %v754, %v778
      %v796 = vld [vmem:[%s415] sm:$0xf]
      %v798 = vperm.slane %v796, 0
      %v799 = vperm.slane %v796, 1
      %v800 = vperm.slane %v796, 2
      %v801 = vperm.slane %v796, 3
      %v806 = vmul.f32 %v798, %v780
      %v807 = vmul.f32 %v799, %v781
      %v808 = vmul.f32 %v800, %v782
      %v809 = vmul.f32 %v801, %v783
      %v810 = vmul.f32 %v798, %v784
      %v811 = vmul.f32 %v799, %v785
      %v812 = vmul.f32 %v800, %v786
      %v813 = vmul.f32 %v801, %v787
      %v814 = vmul.f32 %v798, %v788
      %v815 = vmul.f32 %v799, %v789
      %v816 = vmul.f32 %v800, %v790
      %v817 = vmul.f32 %v801, %v791
      %v818 = vmul.f32 %v798, %v792
      %v819 = vmul.f32 %v799, %v793
      %v820 = vmul.f32 %v800, %v794
      %v821 = vmul.f32 %v801, %v795
      %v822 = vld [vmem:[%s420] sm:$0xf]
      %v823 = vld [vmem:[%s7] sm:$0xff]
      %v824 = vld [vmem:[%s7 + $0x8] sm:$0xff]
      %v825 = vld [vmem:[%s7 + $0x10] sm:$0xff]
      %v826 = vld [vmem:[%s7 + $0x18] sm:$0x1f]
      %v828 = vperm.slane %v822, 0
      %v829 = vperm.slane %v822, 1
      %v830 = vperm.slane %v822, 2
      %v831 = vperm.slane %v822, 3
      %837 = vset.pattern.permute.xlu0 0
      %838 = vperm.xlu0 %837, %v823
      %v839 = vpop.permute.xlu0 %838
      %842 = vset.pattern.permute.xlu0 0
      %843 = vperm.xlu0 %842, %v824
      %v844 = vpop.permute.xlu0 %843
      %847 = vset.pattern.permute.xlu0 0
      %848 = vperm.xlu0 %847, %v825
      %v849 = vpop.permute.xlu0 %848
      %852 = vset.pattern.permute.xlu0 0
      %853 = vperm.xlu0 %852, %v826
      %v854 = vpop.permute.xlu0 %853
      %v856 = vmul.f32 %v828, %v839
      %v857 = vmul.f32 %v829, %v839
      %v858 = vmul.f32 %v830, %v839
      %v859 = vmul.f32 %v831, %v839
      %v860 = vmul.f32 %v828, %v844
      %v861 = vmul.f32 %v829, %v844
      %v862 = vmul.f32 %v830, %v844
      %v863 = vmul.f32 %v831, %v844
      %v864 = vmul.f32 %v828, %v849
      %v865 = vmul.f32 %v829, %v849
      %v866 = vmul.f32 %v830, %v849
      %v867 = vmul.f32 %v831, %v849
      %v868 = vmul.f32 %v828, %v854
      %v869 = vmul.f32 %v829, %v854
      %v870 = vmul.f32 %v830, %v854
      %v871 = vmul.f32 %v831, %v854
      %v872 = vadd.f32 %v806, %v856
      %v873 = vadd.f32 %v807, %v857
      %v874 = vadd.f32 %v808, %v858
      %v875 = vadd.f32 %v809, %v859
      %v876 = vadd.f32 %v810, %v860
      %v877 = vadd.f32 %v811, %v861
      %v878 = vadd.f32 %v812, %v862
      %v879 = vadd.f32 %v813, %v863
      %v880 = vadd.f32 %v814, %v864
      %v881 = vadd.f32 %v815, %v865
      %v882 = vadd.f32 %v816, %v866
      %v883 = vadd.f32 %v817, %v867
      %v884 = vadd.f32 %v818, %v868
      %v885 = vadd.f32 %v819, %v869
      %v886 = vadd.f32 %v820, %v870
      %v887 = vadd.f32 %v821, %v871
      %v888 = vld [vmem:[%s8] sm:$0xff]
      %v889 = vld [vmem:[%s8 + $0x8] sm:$0xff]
      %v890 = vld [vmem:[%s8 + $0x10] sm:$0xff]
      %v891 = vld [vmem:[%s8 + $0x18] sm:$0x1f]
      %893 = vset.pattern.permute.xlu0 0
      %894 = vperm.xlu0 %893, %v888
      %v895 = vpop.permute.xlu0 %894
      %898 = vset.pattern.permute.xlu0 0
      %899 = vperm.xlu0 %898, %v889
      %v900 = vpop.permute.xlu0 %899
      %903 = vset.pattern.permute.xlu0 0
      %904 = vperm.xlu0 %903, %v890
      %v905 = vpop.permute.xlu0 %904
      %908 = vset.pattern.permute.xlu0 0
      %909 = vperm.xlu0 %908, %v891
      %v910 = vpop.permute.xlu0 %909
      %v912 = vadd.f32 %v872, %v895
      %v913 = vadd.f32 %v873, %v895
      %v914 = vadd.f32 %v874, %v895
      %v915 = vadd.f32 %v875, %v895
      %v916 = vadd.f32 %v876, %v900
      %v917 = vadd.f32 %v877, %v900
      %v918 = vadd.f32 %v878, %v900
      %v919 = vadd.f32 %v879, %v900
      %v920 = vadd.f32 %v880, %v905
      %v921 = vadd.f32 %v881, %v905
      %v922 = vadd.f32 %v882, %v905
      %v923 = vadd.f32 %v883, %v905
      %v924 = vadd.f32 %v884, %v910
      %v925 = vadd.f32 %v885, %v910
      %v926 = vadd.f32 %v886, %v910
      %v927 = vadd.f32 %v887, %v910
      %928 = vst [vmem:[%s430] sm:$0xff] %v912
      %929 = vst [vmem:[%s430 + $0x8] sm:$0xff] %v913
      %930 = vst [vmem:[%s430 + $0x10] sm:$0xff] %v914
      %931 = vst [vmem:[%s430 + $0x18] sm:$0xff] %v915
      %932 = vst [vmem:[%s430 + $0x20] sm:$0xff] %v916
      %933 = vst [vmem:[%s430 + $0x28] sm:$0xff] %v917
      %934 = vst [vmem:[%s430 + $0x30] sm:$0xff] %v918
      %935 = vst [vmem:[%s430 + $0x38] sm:$0xff] %v919
      %936 = vst [vmem:[%s430 + $0x40] sm:$0xff] %v920
      %937 = vst [vmem:[%s430 + $0x48] sm:$0xff] %v921
      %938 = vst [vmem:[%s430 + $0x50] sm:$0xff] %v922
      %939 = vst [vmem:[%s430 + $0x58] sm:$0xff] %v923
      %940 = vst [vmem:[%s430 + $0x60] sm:$0x1f] %v924
      %941 = vst [vmem:[%s430 + $0x68] sm:$0x1f] %v925
      %942 = vst [vmem:[%s430 + $0x70] sm:$0x1f] %v926
      %943 = vst [vmem:[%s430 + $0x78] sm:$0x1f] %v927
      %s944 = smul.u32 4, %s25
      %p945 = scmp.lt.s32.totalorder %s24, 1
      %s946 = scalar_select %p945, %s24, 1
      %p947 = scmp.lt.s32.totalorder %s944, 3
      %s948 = scalar_select %p947, %s944, 3
      %s949 = smul.addr %s946, 16
      %s950 = sadd.s32 %s948, %s949
      %s951 = smul.addr %s950, 8
      %s952 = scalar_lea.vmem %s9, %s951
      // Predicated region
      $region57: #{model_forward.1} parent=55 // pred_check
        %p953 = pneg %p263
      $region58: #{model_forward.1} parent=55 // pred_check_branch
        %955 = sbr.rel (%p953) target = $region60
      $region59: #{model_forward.1} parent=55 // pred_region
        %s956 = smul.u32 4, %s25
      $region60: #{model_forward.1} parent=55 // pred_fallthru
        _
    $region56: #{model_forward.1} parent=5 // pred_fallthru
      _
    %p957 = scmp.le.s32.totalorder 2, %s15
    // Predicated region
    $region61: #{model_forward.1} parent=5 // pred_check
      %p958 = pneg %p957
    $region62: #{model_forward.1} parent=5 // pred_check_branch
      %960 = sbr.rel (%p958) target = $region64
    $region63: #{model_forward.1} parent=5 // pred_region
      %s961 = ssub.s32 %s15, 2
      // Predicated region
      $region65: #{model_forward.1} parent=63 // pred_check
        %p962 = pneg %p269
      $region66: #{model_forward.1} parent=63 // pred_check_branch
        %964 = sbr.rel (%p962) target = $region68
      $region67: #{model_forward.1} parent=63 // pred_region
        %s965 = smul.u32 4, %s27
        %p966 = scmp.lt.s32.totalorder %s26, 1
        %s967 = scalar_select %p966, %s26, 1
        %p968 = scmp.lt.s32.totalorder %s965, 3
        %s969 = scalar_select %p968, %s965, 3
        %s970 = smul.addr %s967, 16
        %s971 = sadd.s32 %s969, %s970
        %s972 = smul.addr %s971, 8
        %s973 = scalar_lea.vmem %s9, %s972
      $region68: #{model_forward.1} parent=63 // pred_fallthru
        _
    $region64: #{model_forward.1} parent=5 // pred_fallthru
      _
  $region6: #{model_forward.1} parent=0 // loop_footer
    %s19 = sadd.s32 1, %s15
  $region7: #{model_forward.1} parent=0 // loop_footer_branch
    %14 = sbr.rel target = $region3
  $region8: #{model_forward.1} parent=0 // loop_exit
    _

</llo_original>
